<compile_context>
chip_gen: v7x
topology: tpu7x:2x2x1
jax: 0.10.0
libtpu: 0.0.40
codegen_flags: <defaults>
</compile_context>

<pallas_src>
import math

import jax
import jax.numpy as jnp
from jax.experimental import pallas as pl
from jax.experimental.pallas import tpu as pltpu


def _round_up(x, m):
    return (x + m - 1) // m * m


def _const_block_spec(shape):
    """BlockSpec whose block is constant across the grid (single-buffered)."""
    index_map = lambda n: (0,) * len(shape)
    try:
        return pl.BlockSpec(shape, index_map, pipeline_mode=pl.Buffered(1))
    except (TypeError, AttributeError):   # older jax without pipeline_mode
        return pl.BlockSpec(shape, index_map)


def _make_equal_conv2d_kernel(KH, KW, Wp, Bt, M_pad, scale):
    def kernel(x_ref, w_ref, b_ref, o_ref, col_ref):
        # x_ref:   (Bt, C_pad, L)            flattened, zero-padded inputs
        # w_ref:   (O, KH*KW*C_pad)          raw weights, cols ordered (kh, kw, c)
        # b_ref:   (O, 1)                    f32 bias
        # o_ref:   (Bt, O, M_pad)            output, lane axis = padded H1*Wp
        # col_ref: (KH*KW*C_pad, Bt*M_pad)   VMEM im2col scratch
        C_pad = x_ref.shape[1]

        # Build the im2col slab: one contiguous lane-slice per (image, tap).
        # Row offsets t*C_pad are multiples of 8 and lane offsets b*M_pad are
        # multiples of 128, so every store is an aligned, lane-dense write.
        # TODO(synk): for large-W layers lane-pad Wp to a multiple of 128 so
        # the kh*Wp read starts are lane-aligned and need no XLU rotate.
        for b in range(Bt):                          # static unroll
            for kh in range(KH):
                for kw in range(KW):
                    t = kh * KW + kw
                    col_ref[pl.ds(t * C_pad, C_pad),
                            pl.ds(b * M_pad, M_pad)] = (
                        x_ref[b, :, pl.ds(kh * Wp + kw, M_pad)])

        # Single deep matmul over all taps/channels/images, f32 accumulation.
        # TODO(synk): on v7x (MRB accumulate, 64 MiB VMEM) a scratch-free
        # variant that accumulates per-tap dots straight from x_ref would
        # drop col_ref and its copy traffic.
        acc = jnp.dot(w_ref[...], col_ref[...],
                      preferred_element_type=jnp.float32)    # (O, Bt*M_pad)
        acc = acc * scale + b_ref[...]         # hoisted eq-lr scale + f32 bias

        for b in range(Bt):                    # lane-dense stores per image
            o_ref[b] = acc[:, b * M_pad:(b + 1) * M_pad].astype(o_ref.dtype)

    return kernel


def equal_conv2d(x_nchw, weight_oihw, bias, stride=1, padding=0):
    """EqualConv2d.forward.  x: (N,C,H,W); weight: (O,C,KH,KW); bias: (O,) or None."""
    N, C, H, W = x_nchw.shape
    O, _, KH, KW = weight_oihw.shape
    scale = 1.0 / math.sqrt(C * KH * KW)

    Hp, Wp = H + 2 * padding, W + 2 * padding
    H1, W1 = Hp - KH + 1, Wp - KW + 1              # stride-1 output extent
    H_out = (Hp - KH) // stride + 1
    W_out = (Wp - KW) // stride + 1

    M = H1 * Wp                                    # valid flat output width
    M_pad = _round_up(M, 128)                      # lane-dense output stores
    C_pad = _round_up(C, 8)                        # sublane-aligned slab writes

    # Flat input length so every tap window of every (padded) output column
    # stays in-bounds: last read index = (KH-1)*Wp + (KW-1) + M_pad - 1.
    L = _round_up((KH - 1) * Wp + (KW - 1) + M_pad, 128)

    # Zero-pad channels to C_pad and spatially in NCHW, flatten H,W into one
    # lane axis, zero-pad the flat axis to L.  No layout transpose anywhere.
    # TODO(synk): fold this pad into the kernel (memset + interior copies) to
    # save a full HBM pass on large activations (matters most on v5e).
    x = jnp.pad(x_nchw, ((0, 0), (0, C_pad - C),
                         (padding, padding), (padding, padding)))
    x = x.reshape(N, C_pad, Hp * Wp)
    x = jnp.pad(x, ((0, 0), (0, 0), (0, L - Hp * Wp)))

    # Weight -> (O, KH*KW*C_pad), column order (kh, kw, c), zero-padded C.
    w = jnp.transpose(weight_oihw, (0, 2, 3, 1))            # (O, KH, KW, C)
    w = jnp.pad(w, ((0, 0), (0, 0), (0, 0), (0, C_pad - C)))
    w2d = w.reshape(O, KH * KW * C_pad).astype(x.dtype)     # MXU operand dtype

    if bias is None:
        bias = jnp.zeros((O,), jnp.float32)
    b = bias.reshape(O, 1).astype(jnp.float32)              # bias stays f32

    itemsize = jnp.dtype(x.dtype).itemsize

    def _vmem_need(bt):
        x_block = bt * C_pad * L * itemsize
        o_block = bt * O * M_pad * itemsize
        w_block = O * KH * KW * C_pad * itemsize
        scratch = KH * KW * C_pad * bt * M_pad * itemsize + O * bt * M_pad * 4
        return 2 * (x_block + o_block) + w_block + O * 4 + scratch

    # Batch Bt images per grid step to widen the matmul lane extent (Bt*M_pad)
    # and amortize per-step overhead / DMA setup at small shapes.
    Bt = 1
    for bt in range(1, N + 1):
        if N % bt == 0 and bt * M_pad <= 4096 and _vmem_need(bt) <= (40 << 20):
            Bt = bt

    kernel = _make_equal_conv2d_kernel(KH, KW, Wp, Bt, M_pad, scale)

    # VMEM budget: actual need + headroom, capped below v7x's 64 MiB physical.
    vmem_limit = int(min(56 << 20, max(2 * _vmem_need(Bt), 4 << 20)))

    # TODO(synk): for production StyleGAN2 sizes (C,O up to 512, big H*W) add
    # a second 'parallel' grid axis over halo'd H tiles so per-step blocks fit
    # v7x's 64 MiB VMEM and both of its TensorCores get work when N is small.
    out_flat = pl.pallas_call(
        kernel,
        out_shape=jax.ShapeDtypeStruct((N, O, M_pad), x.dtype),
        grid_spec=pltpu.PrefetchScalarGridSpec(
            num_scalar_prefetch=0,
            grid=(N // Bt,),
            in_specs=[
                pl.BlockSpec((Bt, C_pad, L), lambda n: (n, 0, 0)),
                _const_block_spec((O, KH * KW * C_pad)),
                _const_block_spec((O, 1)),
            ],
            out_specs=pl.BlockSpec((Bt, O, M_pad), lambda n: (n, 0, 0)),
            scratch_shapes=[pltpu.VMEM((KH * KW * C_pad, Bt * M_pad), x.dtype)],
        ),
        compiler_params=pltpu.CompilerParams(
            dimension_semantics=("parallel",),
            vmem_limit_bytes=vmem_limit),
    )(x, w2d, b)

    # (N, O, H1, Wp) view; drop padded/seam columns and apply the stride.
    # Output is already NCHW -> no transpose.
    # TODO(synk): stride>1 computes the stride-1 conv and subsamples; a
    # dedicated path would phase-split the im2col column selection instead.
    # TODO(synk): let downstream consumers read the padded (N,O,H1,Wp) layout
    # directly to avoid this extra HBM crop pass.
    out = out_flat[:, :, :M].reshape(N, O, H1, Wp)[:, :, ::stride, 0:W1:stride]
    assert out.shape == (N, O, H_out, W_out)
    return out


if __name__ == "__main__":
    # Module config: EqualConv2d(in_channel=4, out_channel=8, kernel_size=3,
    #                            stride=1, padding=1, bias=True)
    in_channel, out_channel, kernel_size = 4, 8, 3
    stride, padding = 1, 1
    N, H, W = 2, 16, 16

    key = jax.random.PRNGKey(0)
    kx, kw = jax.random.split(key)
    x = jax.random.normal(kx, (N, in_channel, H, W), jnp.float32)
    # torch.randn init for weight; torch.zeros init for bias.
    weight = jax.random.normal(
        kw, (out_channel, in_channel, kernel_size, kernel_size), jnp.float32)
    bias = jnp.zeros((out_channel,), jnp.float32)

    out = equal_conv2d(x, weight, bias, stride=stride, padding=padding)
    out = jax.block_until_ready(out)

    # Pure-JAX reference.
    scale = 1.0 / math.sqrt(in_channel * kernel_size ** 2)
    ref = jax.lax.conv_general_dilated(
        x, weight * scale,
        window_strides=(stride, stride),
        padding=((padding, padding), (padding, padding)),
        dimension_numbers=("NCHW", "OIHW", "NCHW"),
    ) + bias[None, :, None, None]

    assert out.shape == ref.shape, (out.shape, ref.shape)
    assert jnp.allclose(out, ref, atol=1e-4, rtol=1e-4), float(
        jnp.max(jnp.abs(out - ref)))

    print("KERNEL_OK")
</pallas_src>

<mosaic_0001>
module attributes {stable_mosaic.version = 11 : i64} {
  func.func @kernel(%arg0: i32, %arg1: memref<2x8x512xf32, #tpu.memory_space<vmem>>, %arg2: memref<8x72xf32, #tpu.memory_space<vmem>>, %arg3: memref<8x1xf32, #tpu.memory_space<vmem>>, %arg4: memref<2x8x384xf32, #tpu.memory_space<vmem>>, %arg5: memref<72x768xf32, #tpu.memory_space<vmem>>) attributes {dimension_semantics = [#tpu.dimension_semantics<parallel>], iteration_bounds = array<i64: 1>, scalar_prefetch = 0 : i64, scratch_operands = 1 : i64, tpu.core_type = #tpu.core_type<tc>, window_params = [{transform_indices = @transform_0, window_bounds = array<i64: 2, 8, 512>}, {pipeline_mode = #tpu.pipeline_mode<synchronous>, transform_indices = @transform_1, window_bounds = array<i64: 8, 72>}, {pipeline_mode = #tpu.pipeline_mode<synchronous>, transform_indices = @transform_2, window_bounds = array<i64: 8, 1>}, {transform_indices = @transform_3, window_bounds = array<i64: 2, 8, 384>}]} {
    %c0 = arith.constant 0 : index
    %c0_0 = arith.constant 0 : index
    %c0_1 = arith.constant 0 : index
    %0 = vector.load %arg1[%c0, %c0_0, %c0_1] : memref<2x8x512xf32, #tpu.memory_space<vmem>>, vector<1x8x384xf32>
    %1 = vector.shape_cast %0 : vector<1x8x384xf32> to vector<8x384xf32>
    %c0_2 = arith.constant 0 : index
    %c0_3 = arith.constant 0 : index
    %2 = vector.load %arg5[%c0_2, %c0_3] : memref<72x768xf32, #tpu.memory_space<vmem>>, vector<8x384xf32>
    tpu.vector_store %arg5[%c0_2, %c0_3], %1 {strides = array<i32>} : memref<72x768xf32, #tpu.memory_space<vmem>>, vector<8x384xf32>,
    %c0_4 = arith.constant 0 : index
    %c0_5 = arith.constant 0 : index
    %c1 = arith.constant 1 : index
    %3 = vector.load %arg1[%c0_4, %c0_5, %c1] : memref<2x8x512xf32, #tpu.memory_space<vmem>>, vector<1x8x384xf32>
    %4 = vector.shape_cast %3 : vector<1x8x384xf32> to vector<8x384xf32>
    %c8 = arith.constant 8 : index
    %c0_6 = arith.constant 0 : index
    %5 = vector.load %arg5[%c8, %c0_6] : memref<72x768xf32, #tpu.memory_space<vmem>>, vector<8x384xf32>
    tpu.vector_store %arg5[%c8, %c0_6], %4 {strides = array<i32>} : memref<72x768xf32, #tpu.memory_space<vmem>>, vector<8x384xf32>,
    %c0_7 = arith.constant 0 : index
    %c0_8 = arith.constant 0 : index
    %c2 = arith.constant 2 : index
    %6 = vector.load %arg1[%c0_7, %c0_8, %c2] : memref<2x8x512xf32, #tpu.memory_space<vmem>>, vector<1x8x384xf32>
    %7 = vector.shape_cast %6 : vector<1x8x384xf32> to vector<8x384xf32>
    %c16 = arith.constant 16 : index
    %c0_9 = arith.constant 0 : index
    %8 = vector.load %arg5[%c16, %c0_9] : memref<72x768xf32, #tpu.memory_space<vmem>>, vector<8x384xf32>
    tpu.vector_store %arg5[%c16, %c0_9], %7 {strides = array<i32>} : memref<72x768xf32, #tpu.memory_space<vmem>>, vector<8x384xf32>,
    %c0_10 = arith.constant 0 : index
    %c0_11 = arith.constant 0 : index
    %c18 = arith.constant 18 : index
    %9 = vector.load %arg1[%c0_10, %c0_11, %c18] : memref<2x8x512xf32, #tpu.memory_space<vmem>>, vector<1x8x384xf32>
    %10 = vector.shape_cast %9 : vector<1x8x384xf32> to vector<8x384xf32>
    %c24 = arith.constant 24 : index
    %c0_12 = arith.constant 0 : index
    %11 = vector.load %arg5[%c24, %c0_12] : memref<72x768xf32, #tpu.memory_space<vmem>>, vector<8x384xf32>
    tpu.vector_store %arg5[%c24, %c0_12], %10 {strides = array<i32>} : memref<72x768xf32, #tpu.memory_space<vmem>>, vector<8x384xf32>,
    %c0_13 = arith.constant 0 : index
    %c0_14 = arith.constant 0 : index
    %c19 = arith.constant 19 : index
    %12 = vector.load %arg1[%c0_13, %c0_14, %c19] : memref<2x8x512xf32, #tpu.memory_space<vmem>>, vector<1x8x384xf32>
    %13 = vector.shape_cast %12 : vector<1x8x384xf32> to vector<8x384xf32>
    %c32 = arith.constant 32 : index
    %c0_15 = arith.constant 0 : index
    %14 = vector.load %arg5[%c32, %c0_15] : memref<72x768xf32, #tpu.memory_space<vmem>>, vector<8x384xf32>
    tpu.vector_store %arg5[%c32, %c0_15], %13 {strides = array<i32>} : memref<72x768xf32, #tpu.memory_space<vmem>>, vector<8x384xf32>,
    %c0_16 = arith.constant 0 : index
    %c0_17 = arith.constant 0 : index
    %c20 = arith.constant 20 : index
    %15 = vector.load %arg1[%c0_16, %c0_17, %c20] : memref<2x8x512xf32, #tpu.memory_space<vmem>>, vector<1x8x384xf32>
    %16 = vector.shape_cast %15 : vector<1x8x384xf32> to vector<8x384xf32>
    %c40 = arith.constant 40 : index
    %c0_18 = arith.constant 0 : index
    %17 = vector.load %arg5[%c40, %c0_18] : memref<72x768xf32, #tpu.memory_space<vmem>>, vector<8x384xf32>
    tpu.vector_store %arg5[%c40, %c0_18], %16 {strides = array<i32>} : memref<72x768xf32, #tpu.memory_space<vmem>>, vector<8x384xf32>,
    %c0_19 = arith.constant 0 : index
    %c0_20 = arith.constant 0 : index
    %c36 = arith.constant 36 : index
    %18 = vector.load %arg1[%c0_19, %c0_20, %c36] : memref<2x8x512xf32, #tpu.memory_space<vmem>>, vector<1x8x384xf32>
    %19 = vector.shape_cast %18 : vector<1x8x384xf32> to vector<8x384xf32>
    %c48 = arith.constant 48 : index
    %c0_21 = arith.constant 0 : index
    %20 = vector.load %arg5[%c48, %c0_21] : memref<72x768xf32, #tpu.memory_space<vmem>>, vector<8x384xf32>
    tpu.vector_store %arg5[%c48, %c0_21], %19 {strides = array<i32>} : memref<72x768xf32, #tpu.memory_space<vmem>>, vector<8x384xf32>,
    %c0_22 = arith.constant 0 : index
    %c0_23 = arith.constant 0 : index
    %c37 = arith.constant 37 : index
    %21 = vector.load %arg1[%c0_22, %c0_23, %c37] : memref<2x8x512xf32, #tpu.memory_space<vmem>>, vector<1x8x384xf32>
    %22 = vector.shape_cast %21 : vector<1x8x384xf32> to vector<8x384xf32>
    %c56 = arith.constant 56 : index
    %c0_24 = arith.constant 0 : index
    %23 = vector.load %arg5[%c56, %c0_24] : memref<72x768xf32, #tpu.memory_space<vmem>>, vector<8x384xf32>
    tpu.vector_store %arg5[%c56, %c0_24], %22 {strides = array<i32>} : memref<72x768xf32, #tpu.memory_space<vmem>>, vector<8x384xf32>,
    %c0_25 = arith.constant 0 : index
    %c0_26 = arith.constant 0 : index
    %c38 = arith.constant 38 : index
    %24 = vector.load %arg1[%c0_25, %c0_26, %c38] : memref<2x8x512xf32, #tpu.memory_space<vmem>>, vector<1x8x384xf32>
    %25 = vector.shape_cast %24 : vector<1x8x384xf32> to vector<8x384xf32>
    %c64 = arith.constant 64 : index
    %c0_27 = arith.constant 0 : index
    %26 = vector.load %arg5[%c64, %c0_27] : memref<72x768xf32, #tpu.memory_space<vmem>>, vector<8x384xf32>
    tpu.vector_store %arg5[%c64, %c0_27], %25 {strides = array<i32>} : memref<72x768xf32, #tpu.memory_space<vmem>>, vector<8x384xf32>,
    %c1_28 = arith.constant 1 : index
    %c0_29 = arith.constant 0 : index
    %c0_30 = arith.constant 0 : index
    %27 = vector.load %arg1[%c1_28, %c0_29, %c0_30] : memref<2x8x512xf32, #tpu.memory_space<vmem>>, vector<1x8x384xf32>
    %28 = vector.shape_cast %27 : vector<1x8x384xf32> to vector<8x384xf32>
    %c0_31 = arith.constant 0 : index
    %c384 = arith.constant 384 : index
    %29 = vector.load %arg5[%c0_31, %c384] : memref<72x768xf32, #tpu.memory_space<vmem>>, vector<8x384xf32>
    tpu.vector_store %arg5[%c0_31, %c384], %28 {strides = array<i32>} : memref<72x768xf32, #tpu.memory_space<vmem>>, vector<8x384xf32>,
    %c1_32 = arith.constant 1 : index
    %c0_33 = arith.constant 0 : index
    %c1_34 = arith.constant 1 : index
    %30 = vector.load %arg1[%c1_32, %c0_33, %c1_34] : memref<2x8x512xf32, #tpu.memory_space<vmem>>, vector<1x8x384xf32>
    %31 = vector.shape_cast %30 : vector<1x8x384xf32> to vector<8x384xf32>
    %c8_35 = arith.constant 8 : index
    %c384_36 = arith.constant 384 : index
    %32 = vector.load %arg5[%c8_35, %c384_36] : memref<72x768xf32, #tpu.memory_space<vmem>>, vector<8x384xf32>
    tpu.vector_store %arg5[%c8_35, %c384_36], %31 {strides = array<i32>} : memref<72x768xf32, #tpu.memory_space<vmem>>, vector<8x384xf32>,
    %c1_37 = arith.constant 1 : index
    %c0_38 = arith.constant 0 : index
    %c2_39 = arith.constant 2 : index
    %33 = vector.load %arg1[%c1_37, %c0_38, %c2_39] : memref<2x8x512xf32, #tpu.memory_space<vmem>>, vector<1x8x384xf32>
    %34 = vector.shape_cast %33 : vector<1x8x384xf32> to vector<8x384xf32>
    %c16_40 = arith.constant 16 : index
    %c384_41 = arith.constant 384 : index
    %35 = vector.load %arg5[%c16_40, %c384_41] : memref<72x768xf32, #tpu.memory_space<vmem>>, vector<8x384xf32>
    tpu.vector_store %arg5[%c16_40, %c384_41], %34 {strides = array<i32>} : memref<72x768xf32, #tpu.memory_space<vmem>>, vector<8x384xf32>,
    %c1_42 = arith.constant 1 : index
    %c0_43 = arith.constant 0 : index
    %c18_44 = arith.constant 18 : index
    %36 = vector.load %arg1[%c1_42, %c0_43, %c18_44] : memref<2x8x512xf32, #tpu.memory_space<vmem>>, vector<1x8x384xf32>
    %37 = vector.shape_cast %36 : vector<1x8x384xf32> to vector<8x384xf32>
    %c24_45 = arith.constant 24 : index
    %c384_46 = arith.constant 384 : index
    %38 = vector.load %arg5[%c24_45, %c384_46] : memref<72x768xf32, #tpu.memory_space<vmem>>, vector<8x384xf32>
    tpu.vector_store %arg5[%c24_45, %c384_46], %37 {strides = array<i32>} : memref<72x768xf32, #tpu.memory_space<vmem>>, vector<8x384xf32>,
    %c1_47 = arith.constant 1 : index
    %c0_48 = arith.constant 0 : index
    %c19_49 = arith.constant 19 : index
    %39 = vector.load %arg1[%c1_47, %c0_48, %c19_49] : memref<2x8x512xf32, #tpu.memory_space<vmem>>, vector<1x8x384xf32>
    %40 = vector.shape_cast %39 : vector<1x8x384xf32> to vector<8x384xf32>
    %c32_50 = arith.constant 32 : index
    %c384_51 = arith.constant 384 : index
    %41 = vector.load %arg5[%c32_50, %c384_51] : memref<72x768xf32, #tpu.memory_space<vmem>>, vector<8x384xf32>
    tpu.vector_store %arg5[%c32_50, %c384_51], %40 {strides = array<i32>} : memref<72x768xf32, #tpu.memory_space<vmem>>, vector<8x384xf32>,
    %c1_52 = arith.constant 1 : index
    %c0_53 = arith.constant 0 : index
    %c20_54 = arith.constant 20 : index
    %42 = vector.load %arg1[%c1_52, %c0_53, %c20_54] : memref<2x8x512xf32, #tpu.memory_space<vmem>>, vector<1x8x384xf32>
    %43 = vector.shape_cast %42 : vector<1x8x384xf32> to vector<8x384xf32>
    %c40_55 = arith.constant 40 : index
    %c384_56 = arith.constant 384 : index
    %44 = vector.load %arg5[%c40_55, %c384_56] : memref<72x768xf32, #tpu.memory_space<vmem>>, vector<8x384xf32>
    tpu.vector_store %arg5[%c40_55, %c384_56], %43 {strides = array<i32>} : memref<72x768xf32, #tpu.memory_space<vmem>>, vector<8x384xf32>,
    %c1_57 = arith.constant 1 : index
    %c0_58 = arith.constant 0 : index
    %c36_59 = arith.constant 36 : index
    %45 = vector.load %arg1[%c1_57, %c0_58, %c36_59] : memref<2x8x512xf32, #tpu.memory_space<vmem>>, vector<1x8x384xf32>
    %46 = vector.shape_cast %45 : vector<1x8x384xf32> to vector<8x384xf32>
    %c48_60 = arith.constant 48 : index
    %c384_61 = arith.constant 384 : index
    %47 = vector.load %arg5[%c48_60, %c384_61] : memref<72x768xf32, #tpu.memory_space<vmem>>, vector<8x384xf32>
    tpu.vector_store %arg5[%c48_60, %c384_61], %46 {strides = array<i32>} : memref<72x768xf32, #tpu.memory_space<vmem>>, vector<8x384xf32>,
    %c1_62 = arith.constant 1 : index
    %c0_63 = arith.constant 0 : index
    %c37_64 = arith.constant 37 : index
    %48 = vector.load %arg1[%c1_62, %c0_63, %c37_64] : memref<2x8x512xf32, #tpu.memory_space<vmem>>, vector<1x8x384xf32>
    %49 = vector.shape_cast %48 : vector<1x8x384xf32> to vector<8x384xf32>
    %c56_65 = arith.constant 56 : index
    %c384_66 = arith.constant 384 : index
    %50 = vector.load %arg5[%c56_65, %c384_66] : memref<72x768xf32, #tpu.memory_space<vmem>>, vector<8x384xf32>
    tpu.vector_store %arg5[%c56_65, %c384_66], %49 {strides = array<i32>} : memref<72x768xf32, #tpu.memory_space<vmem>>, vector<8x384xf32>,
    %c1_67 = arith.constant 1 : index
    %c0_68 = arith.constant 0 : index
    %c38_69 = arith.constant 38 : index
    %51 = vector.load %arg1[%c1_67, %c0_68, %c38_69] : memref<2x8x512xf32, #tpu.memory_space<vmem>>, vector<1x8x384xf32>
    %52 = vector.shape_cast %51 : vector<1x8x384xf32> to vector<8x384xf32>
    %c64_70 = arith.constant 64 : index
    %c384_71 = arith.constant 384 : index
    %53 = vector.load %arg5[%c64_70, %c384_71] : memref<72x768xf32, #tpu.memory_space<vmem>>, vector<8x384xf32>
    tpu.vector_store %arg5[%c64_70, %c384_71], %52 {strides = array<i32>} : memref<72x768xf32, #tpu.memory_space<vmem>>, vector<8x384xf32>,
    %c0_72 = arith.constant 0 : index
    %c0_73 = arith.constant 0 : index
    %54 = vector.load %arg2[%c0_72, %c0_73] : memref<8x72xf32, #tpu.memory_space<vmem>>, vector<8x72xf32>
    %c0_74 = arith.constant 0 : index
    %c0_75 = arith.constant 0 : index
    %55 = vector.load %arg5[%c0_74, %c0_75] : memref<72x768xf32, #tpu.memory_space<vmem>>, vector<72x768xf32>
    %cst = arith.constant dense<0.000000e+00> : vector<8x768xf32>
    %56 = tpu.matmul %54, %55, %cst {dimension_numbers = #tpu.dot_dimension_numbers<[1], [0], [0], [1], [0, 0, 1, 1], [], []>} : vector<8x72xf32>, vector<72x768xf32>, vector<8x768xf32> -> vector<8x768xf32>
    %cst_76 = arith.constant 0.166666672 : f32
    %57 = vector.broadcast %cst_76 : f32 to vector<8x768xf32>
    %58 = arith.mulf %56, %57 : vector<8x768xf32>
    %c0_77 = arith.constant 0 : index
    %c0_78 = arith.constant 0 : index
    %59 = vector.load %arg3[%c0_77, %c0_78] : memref<8x1xf32, #tpu.memory_space<vmem>>, vector<8x1xf32>
    %60 = vector.broadcast %59 : vector<8x1xf32> to vector<8x768xf32>
    %61 = arith.addf %58, %60 : vector<8x768xf32>
    %62 = vector.extract_strided_slice %61 {offsets = [0, 0], sizes = [8, 384], strides = [1, 1]} : vector<8x768xf32> to vector<8x384xf32>
    %c0_79 = arith.constant 0 : index
    %c0_80 = arith.constant 0 : index
    %c0_81 = arith.constant 0 : index
    %63 = vector.load %arg4[%c0_79, %c0_80, %c0_81] : memref<2x8x384xf32, #tpu.memory_space<vmem>>, vector<1x8x384xf32>
    %64 = vector.shape_cast %63 : vector<1x8x384xf32> to vector<8x384xf32>
    %65 = vector.shape_cast %62 : vector<8x384xf32> to vector<1x8x384xf32>
    tpu.vector_store %arg4[%c0_79, %c0_80, %c0_81], %65 {strides = array<i32>} : memref<2x8x384xf32, #tpu.memory_space<vmem>>, vector<1x8x384xf32>,
    %66 = vector.extract_strided_slice %61 {offsets = [0, 384], sizes = [8, 384], strides = [1, 1]} : vector<8x768xf32> to vector<8x384xf32>
    %c1_82 = arith.constant 1 : index
    %c0_83 = arith.constant 0 : index
    %c0_84 = arith.constant 0 : index
    %67 = vector.load %arg4[%c1_82, %c0_83, %c0_84] : memref<2x8x384xf32, #tpu.memory_space<vmem>>, vector<1x8x384xf32>
    %68 = vector.shape_cast %67 : vector<1x8x384xf32> to vector<8x384xf32>
    %69 = vector.shape_cast %66 : vector<8x384xf32> to vector<1x8x384xf32>
    tpu.vector_store %arg4[%c1_82, %c0_83, %c0_84], %69 {strides = array<i32>} : memref<2x8x384xf32, #tpu.memory_space<vmem>>, vector<1x8x384xf32>,
    return
  }
  func.func @transform_0(%arg0: i32) -> (i32, i32, i32) {
    %c0_i32 = arith.constant 0 : i32
    %c0_i32_0 = arith.constant 0 : i32
    %c0_i32_1 = arith.constant 0 : i32
    return %arg0, %c0_i32, %c0_i32_0 : i32, i32, i32
  }
  func.func @transform_1(%arg0: i32) -> (i32, i32) {
    %c0_i32 = arith.constant 0 : i32
    %c0_i32_0 = arith.constant 0 : i32
    %c0_i32_1 = arith.constant 0 : i32
    return %c0_i32, %c0_i32_0 : i32, i32
  }
  func.func @transform_2(%arg0: i32) -> (i32, i32) {
    %c0_i32 = arith.constant 0 : i32
    %c0_i32_0 = arith.constant 0 : i32
    %c0_i32_1 = arith.constant 0 : i32
    return %c0_i32, %c0_i32_0 : i32, i32
  }
  func.func @transform_3(%arg0: i32) -> (i32, i32, i32) {
    %c0_i32 = arith.constant 0 : i32
    %c0_i32_0 = arith.constant 0 : i32
    %c0_i32_1 = arith.constant 0 : i32
    return %arg0, %c0_i32, %c0_i32_0 : i32, i32, i32
  }
}

</mosaic_0001>

<llo_original>
// kernel: tpu_custom_call.1
$region0: #{tpu_custom_call.1}
  #allocation0 [shape = 'u32[]', space=smem, size = 0x4, offset = 0x4, fixed_abs, tag = 'smem constant byte address 0x4 - core index']
  #allocation1 [shape = 'u32[144,128]{1,0:T(1,128)}', space=vmem, size = 0x12000, scoped, tag = 'internal scratch']
  #allocation2 [shape = 'f32[72,768]{1,0:T(8,128)}', space=vmem, size = 0x36000, scoped, tag = 'scratch operand']
  %s0 = inlined_call_operand.hbm [shape: f32[2,8,512], index: 0, kind: input, shape index: {}]
  %s1 = inlined_call_operand.vmem [shape: f32[8,72], index: 1, kind: input, shape index: {}]
  %s2 = inlined_call_operand.vmem [shape: f32[8,1], index: 2, kind: input, shape index: {}]
  %s3 = inlined_call_operand.hbm [shape: f32[2,8,384], index: 3, kind: output, shape index: {}]
  %s4 = sld [smem:[#allocation0]]
  $region26: #{tpu_custom_call.1} parent=0
    _
  %s6 = ssub.s32 1, %s4
  %s7 = scalar_select 0, %s6, %s4
  $region1: #{tpu_custom_call.1} parent=0
    #allocation3 [shape = 'u8[32768]{0}', space=vmem, size = 0x8000, scoped, tag = 'input window, operand 0, single buffered']
    #allocation4 [shape = 's32[1]{0}', space=sflag, size = 0x4, scoped, tag = 'scoped memory for tpu_custom_call.1']
    #allocation5 [shape = 's32[1]{0}', space=sflag, size = 0x4, scoped, tag = 'scoped memory for tpu_custom_call.1']
    #allocation6 [shape = 'u8[24576]{0}', space=vmem, size = 0x6000, scoped, tag = 'output window, operand 0, single buffered']
    %8 = vsyncpa [#allocation4], 0
    %9 = vsyncpa [#allocation5], 0
    // Predicated region
    $region2: #{tpu_custom_call.1} parent=1 // pred_check
      _
    $region3: #{tpu_custom_call.1} parent=1 // pred_check_branch
      %11 = sbr.rel (0) target = $region5
    $region4: #{tpu_custom_call.1} parent=1 // pred_region
      %s13 = ssub.s32 1024, 1024
      %14 = vsyncadd [#allocation4], %s13
      %s15 = sshll.u32 [#allocation3], 4
      %s16 = int_to_ptr.vmem [resolvable:$true] %s15
      %21 = dma.hbm_to_vmem [thread:$0]  %s0, 1024, %s16, [#allocation4], 512, 512, 32
    $region5: #{tpu_custom_call.1} parent=1 // pred_fallthru
      _
    // Predicated region
    $region6: #{tpu_custom_call.1} parent=1 // pred_check
      _
    $region7: #{tpu_custom_call.1} parent=1 // pred_check_branch
      %23 = sbr.rel (0) target = $region9
    $region8: #{tpu_custom_call.1} parent=1 // pred_region
      _
    $region9: #{tpu_custom_call.1} parent=1 // pred_fallthru
      _
    // Predicated region
    $region10: #{tpu_custom_call.1} parent=1 // pred_check
      _
    $region11: #{tpu_custom_call.1} parent=1 // pred_check_branch
      %25 = sbr.rel (0) target = $region13
    $region12: #{tpu_custom_call.1} parent=1 // pred_region
      _
    $region13: #{tpu_custom_call.1} parent=1 // pred_fallthru
      _
    // Predicated region
    $region14: #{tpu_custom_call.1} parent=1 // pred_check
      _
    $region15: #{tpu_custom_call.1} parent=1 // pred_check_branch
      %27 = sbr.rel (0) target = $region17
    $region16: #{tpu_custom_call.1} parent=1 // pred_region
      %28 = dma.done [#allocation4], 1024
    $region17: #{tpu_custom_call.1} parent=1 // pred_fallthru
      _
    %v29 = vld [vmem:[#allocation3] sm:$0xff]
    %v30 = vld [vmem:[#allocation3 + $0x8] sm:$0xff]
    %v31 = vld [vmem:[#allocation3 + $0x10] sm:$0xff]
    %32 = vst [vmem:[#allocation2] sm:$0xff] %v29
    %33 = vst [vmem:[#allocation2 + $0x8] sm:$0xff] %v30
    %34 = vst [vmem:[#allocation2 + $0x10] sm:$0xff] %v31
    %v35 = vld [vmem:[#allocation3] sm:$0xff]
    %v36 = vld [vmem:[#allocation3 + $0x8] sm:$0xff]
    %v37 = vld [vmem:[#allocation3 + $0x10] sm:$0xff]
    %v38 = vld [vmem:[#allocation3 + $0x18] sm:$0xff]
    %43 = vrot.lane.b32.xlu0 %v35, 127
    %v44 = vpop.permute.xlu0 %43
    %45 = vrot.lane.b32.xlu0 %v36, 127
    %v46 = vpop.permute.xlu0 %45
    %47 = vrot.lane.b32.xlu0 %v37, 127
    %v48 = vpop.permute.xlu0 %47
    %49 = vrot.lane.b32.xlu0 %v38, 127
    %v50 = vpop.permute.xlu0 %49
    %vm51 = vcmask 1039360
    %v52 = vsel %vm51, %v44, %v46
    %v53 = vsel %vm51, %v46, %v48
    %v54 = vsel %vm51, %v48, %v50
    %58 = vst [vmem:[#allocation2 + $0x30] sm:$0xff] %v52
    %59 = vst [vmem:[#allocation2 + $0x38] sm:$0xff] %v53
    %60 = vst [vmem:[#allocation2 + $0x40] sm:$0xff] %v54
    %v61 = vld [vmem:[#allocation3] sm:$0xff]
    %v62 = vld [vmem:[#allocation3 + $0x8] sm:$0xff]
    %v63 = vld [vmem:[#allocation3 + $0x10] sm:$0xff]
    %v64 = vld [vmem:[#allocation3 + $0x18] sm:$0xff]
    %69 = vrot.lane.b32.xlu0 %v61, 126
    %v70 = vpop.permute.xlu0 %69
    %71 = vrot.lane.b32.xlu0 %v62, 126
    %v72 = vpop.permute.xlu0 %71
    %73 = vrot.lane.b32.xlu0 %v63, 126
    %v74 = vpop.permute.xlu0 %73
    %75 = vrot.lane.b32.xlu0 %v64, 126
    %v76 = vpop.permute.xlu0 %75
    %vm77 = vcmask 1031168
    %v78 = vsel %vm77, %v70, %v72
    %v79 = vsel %vm77, %v72, %v74
    %v80 = vsel %vm77, %v74, %v76
    %84 = vst [vmem:[#allocation2 + $0x60] sm:$0xff] %v78
    %85 = vst [vmem:[#allocation2 + $0x68] sm:$0xff] %v79
    %86 = vst [vmem:[#allocation2 + $0x70] sm:$0xff] %v80
    %v87 = vld [vmem:[#allocation3] sm:$0xff]
    %v88 = vld [vmem:[#allocation3 + $0x8] sm:$0xff]
    %v89 = vld [vmem:[#allocation3 + $0x10] sm:$0xff]
    %v90 = vld [vmem:[#allocation3 + $0x18] sm:$0xff]
    %95 = vrot.lane.b32.xlu0 %v87, 110
    %v96 = vpop.permute.xlu0 %95
    %97 = vrot.lane.b32.xlu0 %v88, 110
    %v98 = vpop.permute.xlu0 %97
    %99 = vrot.lane.b32.xlu0 %v89, 110
    %v100 = vpop.permute.xlu0 %99
    %101 = vrot.lane.b32.xlu0 %v90, 110
    %v102 = vpop.permute.xlu0 %101
    %vm103 = vcmask 900096
    %v104 = vsel %vm103, %v96, %v98
    %v105 = vsel %vm103, %v98, %v100
    %v106 = vsel %vm103, %v100, %v102
    %110 = vst [vmem:[#allocation2 + $0x90] sm:$0xff] %v104
    %111 = vst [vmem:[#allocation2 + $0x98] sm:$0xff] %v105
    %112 = vst [vmem:[#allocation2 + $0xa0] sm:$0xff] %v106
    %v113 = vld [vmem:[#allocation3] sm:$0xff]
    %v114 = vld [vmem:[#allocation3 + $0x8] sm:$0xff]
    %v115 = vld [vmem:[#allocation3 + $0x10] sm:$0xff]
    %v116 = vld [vmem:[#allocation3 + $0x18] sm:$0xff]
    %121 = vrot.lane.b32.xlu0 %v113, 109
    %v122 = vpop.permute.xlu0 %121
    %123 = vrot.lane.b32.xlu0 %v114, 109
    %v124 = vpop.permute.xlu0 %123
    %125 = vrot.lane.b32.xlu0 %v115, 109
    %v126 = vpop.permute.xlu0 %125
    %127 = vrot.lane.b32.xlu0 %v116, 109
    %v128 = vpop.permute.xlu0 %127
    %vm129 = vcmask 891904
    %v130 = vsel %vm129, %v122, %v124
    %v131 = vsel %vm129, %v124, %v126
    %v132 = vsel %vm129, %v126, %v128
    %136 = vst [vmem:[#allocation2 + $0xc0] sm:$0xff] %v130
    %137 = vst [vmem:[#allocation2 + $0xc8] sm:$0xff] %v131
    %138 = vst [vmem:[#allocation2 + $0xd0] sm:$0xff] %v132
    %v139 = vld [vmem:[#allocation3] sm:$0xff]
    %v140 = vld [vmem:[#allocation3 + $0x8] sm:$0xff]
    %v141 = vld [vmem:[#allocation3 + $0x10] sm:$0xff]
    %v142 = vld [vmem:[#allocation3 + $0x18] sm:$0xff]
    %147 = vrot.lane.b32.xlu0 %v139, 108
    %v148 = vpop.permute.xlu0 %147
    %149 = vrot.lane.b32.xlu0 %v140, 108
    %v150 = vpop.permute.xlu0 %149
    %151 = vrot.lane.b32.xlu0 %v141, 108
    %v152 = vpop.permute.xlu0 %151
    %153 = vrot.lane.b32.xlu0 %v142, 108
    %v154 = vpop.permute.xlu0 %153
    %vm155 = vcmask 883712
    %v156 = vsel %vm155, %v148, %v150
    %v157 = vsel %vm155, %v150, %v152
    %v158 = vsel %vm155, %v152, %v154
    %162 = vst [vmem:[#allocation2 + $0xf0] sm:$0xff] %v156
    %163 = vst [vmem:[#allocation2 + $0xf8] sm:$0xff] %v157
    %164 = vst [vmem:[#allocation2 + $0x100] sm:$0xff] %v158
    %v165 = vld [vmem:[#allocation3] sm:$0xff]
    %v166 = vld [vmem:[#allocation3 + $0x8] sm:$0xff]
    %v167 = vld [vmem:[#allocation3 + $0x10] sm:$0xff]
    %v168 = vld [vmem:[#allocation3 + $0x18] sm:$0xff]
    %173 = vrot.lane.b32.xlu0 %v165, 92
    %v174 = vpop.permute.xlu0 %173
    %175 = vrot.lane.b32.xlu0 %v166, 92
    %v176 = vpop.permute.xlu0 %175
    %177 = vrot.lane.b32.xlu0 %v167, 92
    %v178 = vpop.permute.xlu0 %177
    %179 = vrot.lane.b32.xlu0 %v168, 92
    %v180 = vpop.permute.xlu0 %179
    %vm181 = vcmask 752640
    %v182 = vsel %vm181, %v174, %v176
    %v183 = vsel %vm181, %v176, %v178
    %v184 = vsel %vm181, %v178, %v180
    %188 = vst [vmem:[#allocation2 + $0x120] sm:$0xff] %v182
    %189 = vst [vmem:[#allocation2 + $0x128] sm:$0xff] %v183
    %190 = vst [vmem:[#allocation2 + $0x130] sm:$0xff] %v184
    %v191 = vld [vmem:[#allocation3] sm:$0xff]
    %v192 = vld [vmem:[#allocation3 + $0x8] sm:$0xff]
    %v193 = vld [vmem:[#allocation3 + $0x10] sm:$0xff]
    %v194 = vld [vmem:[#allocation3 + $0x18] sm:$0xff]
    %199 = vrot.lane.b32.xlu0 %v191, 91
    %v200 = vpop.permute.xlu0 %199
    %201 = vrot.lane.b32.xlu0 %v192, 91
    %v202 = vpop.permute.xlu0 %201
    %203 = vrot.lane.b32.xlu0 %v193, 91
    %v204 = vpop.permute.xlu0 %203
    %205 = vrot.lane.b32.xlu0 %v194, 91
    %v206 = vpop.permute.xlu0 %205
    %vm207 = vcmask 744448
    %v208 = vsel %vm207, %v200, %v202
    %v209 = vsel %vm207, %v202, %v204
    %v210 = vsel %vm207, %v204, %v206
    %214 = vst [vmem:[#allocation2 + $0x150] sm:$0xff] %v208
    %215 = vst [vmem:[#allocation2 + $0x158] sm:$0xff] %v209
    %216 = vst [vmem:[#allocation2 + $0x160] sm:$0xff] %v210
    %v217 = vld [vmem:[#allocation3] sm:$0xff]
    %v218 = vld [vmem:[#allocation3 + $0x8] sm:$0xff]
    %v219 = vld [vmem:[#allocation3 + $0x10] sm:$0xff]
    %v220 = vld [vmem:[#allocation3 + $0x18] sm:$0xff]
    %225 = vrot.lane.b32.xlu0 %v217, 90
    %v226 = vpop.permute.xlu0 %225
    %227 = vrot.lane.b32.xlu0 %v218, 90
    %v228 = vpop.permute.xlu0 %227
    %229 = vrot.lane.b32.xlu0 %v219, 90
    %v230 = vpop.permute.xlu0 %229
    %231 = vrot.lane.b32.xlu0 %v220, 90
    %v232 = vpop.permute.xlu0 %231
    %vm233 = vcmask 736256
    %v234 = vsel %vm233, %v226, %v228
    %v235 = vsel %vm233, %v228, %v230
    %v236 = vsel %vm233, %v230, %v232
    %240 = vst [vmem:[#allocation2 + $0x180] sm:$0xff] %v234
    %241 = vst [vmem:[#allocation2 + $0x188] sm:$0xff] %v235
    %242 = vst [vmem:[#allocation2 + $0x190] sm:$0xff] %v236
    %s243 = scalar_lea.vmem [#allocation3], 32
    %v244 = vld [vmem:[%s243] sm:$0xff]
    %v245 = vld [vmem:[%s243 + $0x8] sm:$0xff]
    %v246 = vld [vmem:[%s243 + $0x10] sm:$0xff]
    %247 = vst [vmem:[#allocation2 + $0x18] sm:$0xff] %v244
    %248 = vst [vmem:[#allocation2 + $0x20] sm:$0xff] %v245
    %249 = vst [vmem:[#allocation2 + $0x28] sm:$0xff] %v246
    %v250 = vld [vmem:[%s243] sm:$0xff]
    %v251 = vld [vmem:[%s243 + $0x8] sm:$0xff]
    %v252 = vld [vmem:[%s243 + $0x10] sm:$0xff]
    %v253 = vld [vmem:[%s243 + $0x18] sm:$0xff]
    %258 = vrot.lane.b32.xlu0 %v250, 127
    %v259 = vpop.permute.xlu0 %258
    %260 = vrot.lane.b32.xlu0 %v251, 127
    %v261 = vpop.permute.xlu0 %260
    %262 = vrot.lane.b32.xlu0 %v252, 127
    %v263 = vpop.permute.xlu0 %262
    %264 = vrot.lane.b32.xlu0 %v253, 127
    %v265 = vpop.permute.xlu0 %264
    %v266 = vsel %vm51, %v259, %v261
    %v267 = vsel %vm51, %v261, %v263
    %v268 = vsel %vm51, %v263, %v265
    %272 = vst [vmem:[#allocation2 + $0x48] sm:$0xff] %v266
    %273 = vst [vmem:[#allocation2 + $0x50] sm:$0xff] %v267
    %274 = vst [vmem:[#allocation2 + $0x58] sm:$0xff] %v268
    %v275 = vld [vmem:[%s243] sm:$0xff]
    %v276 = vld [vmem:[%s243 + $0x8] sm:$0xff]
    %v277 = vld [vmem:[%s243 + $0x10] sm:$0xff]
    %v278 = vld [vmem:[%s243 + $0x18] sm:$0xff]
    %283 = vrot.lane.b32.xlu0 %v275, 126
    %v284 = vpop.permute.xlu0 %283
    %285 = vrot.lane.b32.xlu0 %v276, 126
    %v286 = vpop.permute.xlu0 %285
    %287 = vrot.lane.b32.xlu0 %v277, 126
    %v288 = vpop.permute.xlu0 %287
    %289 = vrot.lane.b32.xlu0 %v278, 126
    %v290 = vpop.permute.xlu0 %289
    %v291 = vsel %vm77, %v284, %v286
    %v292 = vsel %vm77, %v286, %v288
    %v293 = vsel %vm77, %v288, %v290
    %297 = vst [vmem:[#allocation2 + $0x78] sm:$0xff] %v291
    %298 = vst [vmem:[#allocation2 + $0x80] sm:$0xff] %v292
    %299 = vst [vmem:[#allocation2 + $0x88] sm:$0xff] %v293
    %v300 = vld [vmem:[%s243] sm:$0xff]
    %v301 = vld [vmem:[%s243 + $0x8] sm:$0xff]
    %v302 = vld [vmem:[%s243 + $0x10] sm:$0xff]
    %v303 = vld [vmem:[%s243 + $0x18] sm:$0xff]
    %308 = vrot.lane.b32.xlu0 %v300, 110
    %v309 = vpop.permute.xlu0 %308
    %310 = vrot.lane.b32.xlu0 %v301, 110
    %v311 = vpop.permute.xlu0 %310
    %312 = vrot.lane.b32.xlu0 %v302, 110
    %v313 = vpop.permute.xlu0 %312
    %314 = vrot.lane.b32.xlu0 %v303, 110
    %v315 = vpop.permute.xlu0 %314
    %v316 = vsel %vm103, %v309, %v311
    %v317 = vsel %vm103, %v311, %v313
    %v318 = vsel %vm103, %v313, %v315
    %322 = vst [vmem:[#allocation2 + $0xa8] sm:$0xff] %v316
    %323 = vst [vmem:[#allocation2 + $0xb0] sm:$0xff] %v317
    %324 = vst [vmem:[#allocation2 + $0xb8] sm:$0xff] %v318
    %v325 = vld [vmem:[%s243] sm:$0xff]
    %v326 = vld [vmem:[%s243 + $0x8] sm:$0xff]
    %v327 = vld [vmem:[%s243 + $0x10] sm:$0xff]
    %v328 = vld [vmem:[%s243 + $0x18] sm:$0xff]
    %333 = vrot.lane.b32.xlu0 %v325, 109
    %v334 = vpop.permute.xlu0 %333
    %335 = vrot.lane.b32.xlu0 %v326, 109
    %v336 = vpop.permute.xlu0 %335
    %337 = vrot.lane.b32.xlu0 %v327, 109
    %v338 = vpop.permute.xlu0 %337
    %339 = vrot.lane.b32.xlu0 %v328, 109
    %v340 = vpop.permute.xlu0 %339
    %v341 = vsel %vm129, %v334, %v336
    %v342 = vsel %vm129, %v336, %v338
    %v343 = vsel %vm129, %v338, %v340
    %347 = vst [vmem:[#allocation2 + $0xd8] sm:$0xff] %v341
    %348 = vst [vmem:[#allocation2 + $0xe0] sm:$0xff] %v342
    %349 = vst [vmem:[#allocation2 + $0xe8] sm:$0xff] %v343
    %v350 = vld [vmem:[%s243] sm:$0xff]
    %v351 = vld [vmem:[%s243 + $0x8] sm:$0xff]
    %v352 = vld [vmem:[%s243 + $0x10] sm:$0xff]
    %v353 = vld [vmem:[%s243 + $0x18] sm:$0xff]
    %358 = vrot.lane.b32.xlu0 %v350, 108
    %v359 = vpop.permute.xlu0 %358
    %360 = vrot.lane.b32.xlu0 %v351, 108
    %v361 = vpop.permute.xlu0 %360
    %362 = vrot.lane.b32.xlu0 %v352, 108
    %v363 = vpop.permute.xlu0 %362
    %364 = vrot.lane.b32.xlu0 %v353, 108
    %v365 = vpop.permute.xlu0 %364
    %v366 = vsel %vm155, %v359, %v361
    %v367 = vsel %vm155, %v361, %v363
    %v368 = vsel %vm155, %v363, %v365
    %372 = vst [vmem:[#allocation2 + $0x108] sm:$0xff] %v366
    %373 = vst [vmem:[#allocation2 + $0x110] sm:$0xff] %v367
    %374 = vst [vmem:[#allocation2 + $0x118] sm:$0xff] %v368
    %v375 = vld [vmem:[%s243] sm:$0xff]
    %v376 = vld [vmem:[%s243 + $0x8] sm:$0xff]
    %v377 = vld [vmem:[%s243 + $0x10] sm:$0xff]
    %v378 = vld [vmem:[%s243 + $0x18] sm:$0xff]
    %383 = vrot.lane.b32.xlu0 %v375, 92
    %v384 = vpop.permute.xlu0 %383
    %385 = vrot.lane.b32.xlu0 %v376, 92
    %v386 = vpop.permute.xlu0 %385
    %387 = vrot.lane.b32.xlu0 %v377, 92
    %v388 = vpop.permute.xlu0 %387
    %389 = vrot.lane.b32.xlu0 %v378, 92
    %v390 = vpop.permute.xlu0 %389
    %v391 = vsel %vm181, %v384, %v386
    %v392 = vsel %vm181, %v386, %v388
    %v393 = vsel %vm181, %v388, %v390
    %397 = vst [vmem:[#allocation2 + $0x138] sm:$0xff] %v391
    %398 = vst [vmem:[#allocation2 + $0x140] sm:$0xff] %v392
    %399 = vst [vmem:[#allocation2 + $0x148] sm:$0xff] %v393
    %v400 = vld [vmem:[%s243] sm:$0xff]
    %v401 = vld [vmem:[%s243 + $0x8] sm:$0xff]
    %v402 = vld [vmem:[%s243 + $0x10] sm:$0xff]
    %v403 = vld [vmem:[%s243 + $0x18] sm:$0xff]
    %408 = vrot.lane.b32.xlu0 %v400, 91
    %v409 = vpop.permute.xlu0 %408
    %410 = vrot.lane.b32.xlu0 %v401, 91
    %v411 = vpop.permute.xlu0 %410
    %412 = vrot.lane.b32.xlu0 %v402, 91
    %v413 = vpop.permute.xlu0 %412
    %414 = vrot.lane.b32.xlu0 %v403, 91
    %v415 = vpop.permute.xlu0 %414
    %v416 = vsel %vm207, %v409, %v411
    %v417 = vsel %vm207, %v411, %v413
    %v418 = vsel %vm207, %v413, %v415
    %422 = vst [vmem:[#allocation2 + $0x168] sm:$0xff] %v416
    %423 = vst [vmem:[#allocation2 + $0x170] sm:$0xff] %v417
    %424 = vst [vmem:[#allocation2 + $0x178] sm:$0xff] %v418
    %v425 = vld [vmem:[%s243] sm:$0xff]
    %v426 = vld [vmem:[%s243 + $0x8] sm:$0xff]
    %v427 = vld [vmem:[%s243 + $0x10] sm:$0xff]
    %v428 = vld [vmem:[%s243 + $0x18] sm:$0xff]
    %433 = vrot.lane.b32.xlu0 %v425, 90
    %v434 = vpop.permute.xlu0 %433
    %435 = vrot.lane.b32.xlu0 %v426, 90
    %v436 = vpop.permute.xlu0 %435
    %437 = vrot.lane.b32.xlu0 %v427, 90
    %v438 = vpop.permute.xlu0 %437
    %439 = vrot.lane.b32.xlu0 %v428, 90
    %v440 = vpop.permute.xlu0 %439
    %v441 = vsel %vm233, %v434, %v436
    %v442 = vsel %vm233, %v436, %v438
    %v443 = vsel %vm233, %v438, %v440
    %447 = vst [vmem:[#allocation2 + $0x198] sm:$0xff] %v441
    %448 = vst [vmem:[#allocation2 + $0x1a0] sm:$0xff] %v442
    %449 = vst [vmem:[#allocation2 + $0x1a8] sm:$0xff] %v443
    %v450 = vld [vmem:[%s1] sm:$0xff]
    %v451 = vld [vmem:[#allocation2] sm:$0xff]
    %v452 = vld [vmem:[#allocation2 + $0x8] sm:$0xff]
    %v453 = vld [vmem:[#allocation2 + $0x10] sm:$0xff]
    %v454 = vld [vmem:[#allocation2 + $0x18] sm:$0xff]
    %v455 = vld [vmem:[#allocation2 + $0x20] sm:$0xff]
    %v456 = vld [vmem:[#allocation2 + $0x28] sm:$0xff]
    %v457 = vld [vmem:[#allocation2 + $0x30] sm:$0xff]
    %v458 = vld [vmem:[#allocation2 + $0x38] sm:$0xff]
    %v459 = vld [vmem:[#allocation2 + $0x40] sm:$0xff]
    %v460 = vld [vmem:[#allocation2 + $0x48] sm:$0xff]
    %v461 = vld [vmem:[#allocation2 + $0x50] sm:$0xff]
    %v462 = vld [vmem:[#allocation2 + $0x58] sm:$0xff]
    %v463 = vld [vmem:[#allocation2 + $0x60] sm:$0xff]
    %v464 = vld [vmem:[#allocation2 + $0x68] sm:$0xff]
    %v465 = vld [vmem:[#allocation2 + $0x70] sm:$0xff]
    %v466 = vld [vmem:[#allocation2 + $0x78] sm:$0xff]
    %v467 = vld [vmem:[#allocation2 + $0x80] sm:$0xff]
    %v468 = vld [vmem:[#allocation2 + $0x88] sm:$0xff]
    %v469 = vld [vmem:[#allocation2 + $0x90] sm:$0xff]
    %v470 = vld [vmem:[#allocation2 + $0x98] sm:$0xff]
    %v471 = vld [vmem:[#allocation2 + $0xa0] sm:$0xff]
    %v472 = vld [vmem:[#allocation2 + $0xa8] sm:$0xff]
    %v473 = vld [vmem:[#allocation2 + $0xb0] sm:$0xff]
    %v474 = vld [vmem:[#allocation2 + $0xb8] sm:$0xff]
    %v475 = vld [vmem:[#allocation2 + $0xc0] sm:$0xff]
    %v476 = vld [vmem:[#allocation2 + $0xc8] sm:$0xff]
    %v477 = vld [vmem:[#allocation2 + $0xd0] sm:$0xff]
    %v478 = vld [vmem:[#allocation2 + $0xd8] sm:$0xff]
    %v479 = vld [vmem:[#allocation2 + $0xe0] sm:$0xff]
    %v480 = vld [vmem:[#allocation2 + $0xe8] sm:$0xff]
    %v481 = vld [vmem:[#allocation2 + $0xf0] sm:$0xff]
    %v482 = vld [vmem:[#allocation2 + $0xf8] sm:$0xff]
    %v483 = vld [vmem:[#allocation2 + $0x100] sm:$0xff]
    %v484 = vld [vmem:[#allocation2 + $0x108] sm:$0xff]
    %v485 = vld [vmem:[#allocation2 + $0x110] sm:$0xff]
    %v486 = vld [vmem:[#allocation2 + $0x118] sm:$0xff]
    %v487 = vld [vmem:[#allocation2 + $0x120] sm:$0xff]
    %v488 = vld [vmem:[#allocation2 + $0x128] sm:$0xff]
    %v489 = vld [vmem:[#allocation2 + $0x130] sm:$0xff]
    %v490 = vld [vmem:[#allocation2 + $0x138] sm:$0xff]
    %v491 = vld [vmem:[#allocation2 + $0x140] sm:$0xff]
    %v492 = vld [vmem:[#allocation2 + $0x148] sm:$0xff]
    %v493 = vld [vmem:[#allocation2 + $0x150] sm:$0xff]
    %v494 = vld [vmem:[#allocation2 + $0x158] sm:$0xff]
    %v495 = vld [vmem:[#allocation2 + $0x160] sm:$0xff]
    %v496 = vld [vmem:[#allocation2 + $0x168] sm:$0xff]
    %v497 = vld [vmem:[#allocation2 + $0x170] sm:$0xff]
    %v498 = vld [vmem:[#allocation2 + $0x178] sm:$0xff]
    %v499 = vld [vmem:[#allocation2 + $0x180] sm:$0xff]
    %v500 = vld [vmem:[#allocation2 + $0x188] sm:$0xff]
    %v501 = vld [vmem:[#allocation2 + $0x190] sm:$0xff]
    %v502 = vld [vmem:[#allocation2 + $0x198] sm:$0xff]
    %v503 = vld [vmem:[#allocation2 + $0x1a0] sm:$0xff]
    %v504 = vld [vmem:[#allocation2 + $0x1a8] sm:$0xff]
    %vm505 = vcmask 588800
    %v507 = vsel %vm505, %v450, 0
    %509 = vmatprep.subr.mxu0 %v452
    %510 = vmatpush1.msra.mxu0 %v451
    %511 = vmatprep.subr.mxu0 %v458
    %512 = vmatpush1.msra.mxu0 %v457
    %513 = vmatprep.subr.mxu0 %v464
    %514 = vmatpush1.msra.mxu0 %v463
    %515 = vmatprep.subr.mxu0 %v470
    %516 = vmatpush1.msra.mxu0 %v469
    %517 = vmatprep.subr.mxu0 %v476
    %518 = vmatpush1.msra.mxu0 %v475
    %519 = vmatprep.subr.mxu0 %v482
    %520 = vmatpush1.msra.mxu0 %v481
    %521 = vmatprep.subr.mxu0 %v488
    %522 = vmatpush1.msra.mxu0 %v487
    %523 = vmatprep.subr.mxu0 %v494
    %524 = vmatpush1.msra.mxu0 %v493
    %525 = vmatprep.subr.mxu0 %v500
    %526 = vmatpush1.msra.mxu0 %v499
    %527 = vmatprep.subr.mxu0 0.0
    %528 = vmatpush1.msra.mxu0 0.0
    %529 = vmatprep.subr.mxu0 0.0
    %530 = vmatpush1.msra.mxu0 0.0
    %531 = vmatprep.subr.mxu0 0.0
    %532 = vmatpush1.msra.mxu0 0.0
    %533 = vmatprep.subr.mxu0 0.0
    %534 = vmatpush1.msra.mxu0 0.0
    %535 = vmatprep.subr.mxu0 0.0
    %536 = vmatpush1.msra.mxu0 0.0
    %537 = vmatprep.subr.mxu0 0.0
    %538 = vmatpush1.msra.mxu0 0.0
    %539 = vmatprep.subr.mxu0 0.0
    %540 = vmatpush1.msra.mxu0 0.0
    %541 = vmatprep.subr.mxu0 0.0
    %542 = vmatpush1.msra.mxu0 0.0
    %543 = vmatprep.subr.mxu0 0.0
    %544 = vmatpush1.msra.mxu0 0.0
    %545 = vmatprep.subr.mxu0 0.0
    %546 = vmatpush1.msra.mxu0 0.0
    %547 = vmatprep.subr.mxu0 0.0
    %548 = vmatpush1.msra.mxu0 0.0
    %549 = vmatprep.subr.mxu0 0.0
    %550 = vmatpush1.msra.mxu0 0.0
    %551 = vmatprep.subr.mxu0 0.0
    %552 = vmatpush1.msra.mxu0 0.0
    %553 = vmatprep.subr.mxu0 0.0
    %554 = vmatpush1.msra.mxu0 0.0
    %555 = vmatprep.subr.mxu0 0.0
    %556 = vmatpush1.msra.mxu0 0.0
    %557 = vmatprep.subr.mxu0 0.0
    %558 = vmatpush1.msra.mxu0 0.0
    %559 = vmatprep.subr.mxu0 0.0
    %560 = vmatpush1.msra.mxu0 0.0
    %561 = vmatprep.subr.mxu0 0.0
    %562 = vmatpush1.msra.mxu0 0.0
    %563 = vmatprep.subr.mxu0 0.0
    %564 = vmatpush1.msra.mxu0 0.0
    %565 = vmatprep.subr.mxu0 0.0
    %566 = vmatpush1.msra.mxu0 0.0
    %567 = vmatprep.subr.mxu0 0.0
    %568 = vmatpush1.msra.mxu0 0.0
    %569 = vmatprep.subr.mxu0 0.0
    %570 = vmatpush1.msra.mxu0 0.0
    %571 = vmatprep.subr.mxu0 0.0
    %572 = vmatpush1.msra.mxu0 0.0
    %573 = vmatprep.mubr.f32.mxu0 0.0
    %574 = vmatmul.mubr.f32.gmra.mrb[0].mxu0 %v507
    %v575 = vpop.f32.mrb[0].mxu0
    %v576 = vadd.f32 0.0, %v575
    %v577 = vpop.f32.mrb[0].mxu0
    %v578 = vadd.f32 0.0, %v577
    %579 = vdwg.mxu0
    %580 = vmatprep.subr.mxu0 %v454
    %581 = vmatpush1.msra.mxu0 %v453
    %582 = vmatprep.subr.mxu0 %v460
    %583 = vmatpush1.msra.mxu0 %v459
    %584 = vmatprep.subr.mxu0 %v466
    %585 = vmatpush1.msra.mxu0 %v465
    %586 = vmatprep.subr.mxu0 %v472
    %587 = vmatpush1.msra.mxu0 %v471
    %588 = vmatprep.subr.mxu0 %v478
    %589 = vmatpush1.msra.mxu0 %v477
    %590 = vmatprep.subr.mxu0 %v484
    %591 = vmatpush1.msra.mxu0 %v483
    %592 = vmatprep.subr.mxu0 %v490
    %593 = vmatpush1.msra.mxu0 %v489
    %594 = vmatprep.subr.mxu0 %v496
    %595 = vmatpush1.msra.mxu0 %v495
    %596 = vmatprep.subr.mxu0 %v502
    %597 = vmatpush1.msra.mxu0 %v501
    %598 = vmatprep.subr.mxu0 0.0
    %599 = vmatpush1.msra.mxu0 0.0
    %600 = vmatprep.subr.mxu0 0.0
    %601 = vmatpush1.msra.mxu0 0.0
    %602 = vmatprep.subr.mxu0 0.0
    %603 = vmatpush1.msra.mxu0 0.0
    %604 = vmatprep.subr.mxu0 0.0
    %605 = vmatpush1.msra.mxu0 0.0
    %606 = vmatprep.subr.mxu0 0.0
    %607 = vmatpush1.msra.mxu0 0.0
    %608 = vmatprep.subr.mxu0 0.0
    %609 = vmatpush1.msra.mxu0 0.0
    %610 = vmatprep.subr.mxu0 0.0
    %611 = vmatpush1.msra.mxu0 0.0
    %612 = vmatprep.subr.mxu0 0.0
    %613 = vmatpush1.msra.mxu0 0.0
    %614 = vmatprep.subr.mxu0 0.0
    %615 = vmatpush1.msra.mxu0 0.0
    %616 = vmatprep.subr.mxu0 0.0
    %617 = vmatpush1.msra.mxu0 0.0
    %618 = vmatprep.subr.mxu0 0.0
    %619 = vmatpush1.msra.mxu0 0.0
    %620 = vmatprep.subr.mxu0 0.0
    %621 = vmatpush1.msra.mxu0 0.0
    %622 = vmatprep.subr.mxu0 0.0
    %623 = vmatpush1.msra.mxu0 0.0
    %624 = vmatprep.subr.mxu0 0.0
    %625 = vmatpush1.msra.mxu0 0.0
    %626 = vmatprep.subr.mxu0 0.0
    %627 = vmatpush1.msra.mxu0 0.0
    %628 = vmatprep.subr.mxu0 0.0
    %629 = vmatpush1.msra.mxu0 0.0
    %630 = vmatprep.subr.mxu0 0.0
    %631 = vmatpush1.msra.mxu0 0.0
    %632 = vmatprep.subr.mxu0 0.0
    %633 = vmatpush1.msra.mxu0 0.0
    %634 = vmatprep.subr.mxu0 0.0
    %635 = vmatpush1.msra.mxu0 0.0
    %636 = vmatprep.subr.mxu0 0.0
    %637 = vmatpush1.msra.mxu0 0.0
    %638 = vmatprep.subr.mxu0 0.0
    %639 = vmatpush1.msra.mxu0 0.0
    %640 = vmatprep.subr.mxu0 0.0
    %641 = vmatpush1.msra.mxu0 0.0
    %642 = vmatprep.subr.mxu0 0.0
    %643 = vmatpush1.msra.mxu0 0.0
    %644 = vmatprep.mubr.f32.mxu0 0.0
    %645 = vmatmul.mubr.f32.gmra.mrb[0].mxu0 %v507
    %v646 = vpop.f32.mrb[0].mxu0
    %v647 = vadd.f32 0.0, %v646
    %v648 = vpop.f32.mrb[0].mxu0
    %v649 = vadd.f32 0.0, %v648
    %650 = vdwg.mxu0
    %651 = vmatprep.subr.mxu0 %v456
    %652 = vmatpush1.msra.mxu0 %v455
    %653 = vmatprep.subr.mxu0 %v462
    %654 = vmatpush1.msra.mxu0 %v461
    %655 = vmatprep.subr.mxu0 %v468
    %656 = vmatpush1.msra.mxu0 %v467
    %657 = vmatprep.subr.mxu0 %v474
    %658 = vmatpush1.msra.mxu0 %v473
    %659 = vmatprep.subr.mxu0 %v480
    %660 = vmatpush1.msra.mxu0 %v479
    %661 = vmatprep.subr.mxu0 %v486
    %662 = vmatpush1.msra.mxu0 %v485
    %663 = vmatprep.subr.mxu0 %v492
    %664 = vmatpush1.msra.mxu0 %v491
    %665 = vmatprep.subr.mxu0 %v498
    %666 = vmatpush1.msra.mxu0 %v497
    %667 = vmatprep.subr.mxu0 %v504
    %668 = vmatpush1.msra.mxu0 %v503
    %669 = vmatprep.subr.mxu0 0.0
    %670 = vmatpush1.msra.mxu0 0.0
    %671 = vmatprep.subr.mxu0 0.0
    %672 = vmatpush1.msra.mxu0 0.0
    %673 = vmatprep.subr.mxu0 0.0
    %674 = vmatpush1.msra.mxu0 0.0
    %675 = vmatprep.subr.mxu0 0.0
    %676 = vmatpush1.msra.mxu0 0.0
    %677 = vmatprep.subr.mxu0 0.0
    %678 = vmatpush1.msra.mxu0 0.0
    %679 = vmatprep.subr.mxu0 0.0
    %680 = vmatpush1.msra.mxu0 0.0
    %681 = vmatprep.subr.mxu0 0.0
    %682 = vmatpush1.msra.mxu0 0.0
    %683 = vmatprep.subr.mxu0 0.0
    %684 = vmatpush1.msra.mxu0 0.0
    %685 = vmatprep.subr.mxu0 0.0
    %686 = vmatpush1.msra.mxu0 0.0
    %687 = vmatprep.subr.mxu0 0.0
    %688 = vmatpush1.msra.mxu0 0.0
    %689 = vmatprep.subr.mxu0 0.0
    %690 = vmatpush1.msra.mxu0 0.0
    %691 = vmatprep.subr.mxu0 0.0
    %692 = vmatpush1.msra.mxu0 0.0
    %693 = vmatprep.subr.mxu0 0.0
    %694 = vmatpush1.msra.mxu0 0.0
    %695 = vmatprep.subr.mxu0 0.0
    %696 = vmatpush1.msra.mxu0 0.0
    %697 = vmatprep.subr.mxu0 0.0
    %698 = vmatpush1.msra.mxu0 0.0
    %699 = vmatprep.subr.mxu0 0.0
    %700 = vmatpush1.msra.mxu0 0.0
    %701 = vmatprep.subr.mxu0 0.0
    %702 = vmatpush1.msra.mxu0 0.0
    %703 = vmatprep.subr.mxu0 0.0
    %704 = vmatpush1.msra.mxu0 0.0
    %705 = vmatprep.subr.mxu0 0.0
    %706 = vmatpush1.msra.mxu0 0.0
    %707 = vmatprep.subr.mxu0 0.0
    %708 = vmatpush1.msra.mxu0 0.0
    %709 = vmatprep.subr.mxu0 0.0
    %710 = vmatpush1.msra.mxu0 0.0
    %711 = vmatprep.subr.mxu0 0.0
    %712 = vmatpush1.msra.mxu0 0.0
    %713 = vmatprep.subr.mxu0 0.0
    %714 = vmatpush1.msra.mxu0 0.0
    %715 = vmatprep.mubr.f32.mxu0 0.0
    %716 = vmatmul.mubr.f32.gmra.mrb[0].mxu0 %v507
    %v717 = vpop.f32.mrb[0].mxu0
    %v718 = vadd.f32 0.0, %v717
    %v719 = vpop.f32.mrb[0].mxu0
    %v720 = vadd.f32 0.0, %v719
    %721 = vdwg.mxu0
    %v722 = vmul.f32 %v576, 0.16666667
    %v723 = vmul.f32 %v578, 0.16666667
    %v724 = vmul.f32 %v647, 0.16666667
    %v725 = vmul.f32 %v649, 0.16666667
    %v726 = vmul.f32 %v718, 0.16666667
    %v727 = vmul.f32 %v720, 0.16666667
    %v728 = vld [vmem:[%s2] sm:$0xff]
    %730 = vset.pattern.permute.xlu0 0
    %731 = vperm.xlu0 %730, %v728
    %v732 = vpop.permute.xlu0 %731
    %v734 = vadd.f32 %v722, %v732
    %v735 = vadd.f32 %v723, %v732
    %v736 = vadd.f32 %v724, %v732
    %v737 = vadd.f32 %v725, %v732
    %v738 = vadd.f32 %v726, %v732
    %v739 = vadd.f32 %v727, %v732
    %740 = vst [vmem:[#allocation6] sm:$0xff] %v734
    %741 = vst [vmem:[#allocation6 + $0x8] sm:$0xff] %v735
    %742 = vst [vmem:[#allocation6 + $0x10] sm:$0xff] %v736
    %s743 = scalar_lea.vmem [#allocation6], 24
    %744 = vst [vmem:[%s743] sm:$0xff] %v737
    %745 = vst [vmem:[%s743 + $0x8] sm:$0xff] %v738
    %746 = vst [vmem:[%s743 + $0x10] sm:$0xff] %v739
    // Predicated region
    $region18: #{tpu_custom_call.1} parent=1 // pred_check
      _
    $region19: #{tpu_custom_call.1} parent=1 // pred_check_branch
      %748 = sbr.rel (0) target = $region21
    $region20: #{tpu_custom_call.1} parent=1 // pred_region
      %s750 = ssub.s32 768, 768
      %751 = vsyncadd [#allocation5], %s750
      %s752 = sshll.u32 [#allocation6], 4
      %s753 = int_to_ptr.vmem [resolvable:$true] %s752
      %758 = dma.vmem_to_hbm [thread:$0]  %s753, 768, %s3, [#allocation5], 384, 384, 24
    $region21: #{tpu_custom_call.1} parent=1 // pred_fallthru
      _
    // Predicated region
    $region22: #{tpu_custom_call.1} parent=1 // pred_check
      _
    $region23: #{tpu_custom_call.1} parent=1 // pred_check_branch
      %760 = sbr.rel (0) target = $region25
    $region24: #{tpu_custom_call.1} parent=1 // pred_region
      %761 = dma.done [#allocation5], 768
    $region25: #{tpu_custom_call.1} parent=1 // pred_fallthru
      _
    %762 = vsyncpa [#allocation4], 1
    %763 = vsyncpa [#allocation5], 1

</llo_original>
